<compile_context>
chip_gen: v5e
topology: v5e:2x2
jax: 0.10.0
libtpu: 0.0.40
codegen_flags: <defaults>
</compile_context>

<pallas_src>
import math
import functools

import jax
import jax.numpy as jnp
from jax.experimental import pallas as pl
from jax.experimental.pallas import tpu as pltpu


# ----------------------------------------------------------------------------
# Single-step cell kernel (matches HMLSTMCell.forward exactly).
# ----------------------------------------------------------------------------
def _hmlstm_step_kernel(xcat_ref, h0_ref, c0_ref, ztm1_ref, zlm1_ref,
                        w_ref, bias_ref,
                        h1_ref, c1_ref, zmask_ref, *, hidden_size, slope):
    H = hidden_size

    h0 = h0_ref[...]
    c0 = c0_ref[...]
    z_tm1 = ztm1_ref[...]          # (B, 1)
    z_lm1 = zlm1_ref[...]          # (B, 1)

    # One fused MXU matmul:
    #   [z_lm1*xb | z_tm1*xt | h0] @ [W_bh; W_th; W_hh] + bias
    pre = jnp.dot(xcat_ref[...], w_ref[...],
                  preferred_element_type=jnp.float32) + bias_ref[...]

    # One EUP pass over the whole 4H gate block; slice afterwards.
    sig = jax.nn.sigmoid(pre[:, :4 * H])
    f = sig[:, 0 * H:1 * H]
    i = sig[:, 1 * H:2 * H]
    o = sig[:, 2 * H:3 * H]
    g = jnp.tanh(pre[:, 3 * H:4 * H])
    z = pre[:, 4 * H:4 * H + 1]            # (B, 1)

    c_1 = (1.0 - z_tm1) * f * c0 + i * g
    h_1 = o * jnp.tanh(c_1)

    mask = jnp.minimum(z_lm1 + z_tm1, 1.0)       # clamp(max=1)
    c_1 = mask * c_1 + (1.0 - mask) * c0
    h_1 = mask * h_1 + (1.0 - mask) * h0

    # straight-through hard sigmoid forward.
    hard = jnp.clip(slope * z + 0.5, 0.0, 1.0)
    zmask_ref[...] = jnp.where(hard > 0.5, 1.0, 0.0).astype(jnp.float32)
    h1_ref[...] = h_1
    c1_ref[...] = c_1


def hmlstm_cell(input_bottom, input_top, h_0, c_0, z_tm1, z_lm1,
                weight_bh, weight_hh, weight_th, bias, *, slope=0.5):
    """Single-step Pallas HMLSTM cell. Returns (h_1, c_1, z_mask)."""
    B, H = h_0.shape
    G = 4 * H + 1

    z_tm1_2d = z_tm1.reshape(B, 1).astype(jnp.float32)
    z_lm1_2d = z_lm1.reshape(B, 1).astype(jnp.float32)
    bias_2d = bias.reshape(1, G).astype(jnp.float32)

    # Fold boundary scales into the narrow inputs and fuse the three matmuls
    # into one (contraction dim = input_size + 2*hidden_size). Cheap XLA ops;
    # they fuse away under jit.
    x_cat = jnp.concatenate(
        [z_lm1_2d * input_bottom, z_tm1_2d * input_top, h_0], axis=1)
    w_cat = jnp.concatenate([weight_bh, weight_th, weight_hh], axis=0)

    vmem = pl.BlockSpec(memory_space=pltpu.MemorySpace.VMEM)
    kernel = functools.partial(_hmlstm_step_kernel, hidden_size=H, slope=slope)

    h_1, c_1, z_mask = pl.pallas_call(
        kernel,
        out_shape=(
            jax.ShapeDtypeStruct((B, H), jnp.float32),
            jax.ShapeDtypeStruct((B, H), jnp.float32),
            jax.ShapeDtypeStruct((B, 1), jnp.float32),
        ),
        in_specs=[vmem] * 7,
        out_specs=(vmem, vmem, vmem),
    )(x_cat, h_0, c_0, z_tm1_2d, z_lm1_2d, w_cat, bias_2d)

    return h_1, c_1, z_mask.reshape(B)   # .squeeze() in torch -> (B,)


# ----------------------------------------------------------------------------
# In-kernel sequence recurrence: T steps inside ONE pallas_call, weights/bias
# resident in VMEM, h/c/z carried in VMEM scratch across grid steps.
# ----------------------------------------------------------------------------
def _hmlstm_seq_kernel(xbt_ref, zlm1_ref, h0_ref, c0_ref, z0_ref,
                       wbt_ref, whh_ref, bias_ref,
                       hseq_ref, cseq_ref, zseq_ref,
                       h_sc, c_sc, z_sc, *, input_size, hidden_size, slope):
    H = hidden_size
    IN = input_size
    t = pl.program_id(0)

    @pl.when(t == 0)
    def _():
        h_sc[...] = h0_ref[...]
        c_sc[...] = c0_ref[...]
        z_sc[...] = z0_ref[...]

    h_prev = h_sc[...]
    c_prev = c_sc[...]
    z_tm1 = z_sc[...]              # (B, 1) boundary from this layer, prev step
    z_lm1 = zlm1_ref[...]          # (B, 1) boundary from lower layer, this step

    # Bottom input is already scaled by z_lm1 in the wrapper; apply the
    # recurrent z_tm1 scale only to the "top" lanes via a lane select
    # (no in-kernel concat needed).
    xbt = xbt_ref[...]                                        # (B, IN + H)
    col = jax.lax.broadcasted_iota(jnp.int32, xbt.shape, 1)
    xbt = jnp.where(col < IN, xbt, z_tm1 * xbt)

    pre = (jnp.dot(xbt, wbt_ref[...], preferred_element_type=jnp.float32)
           + jnp.dot(h_prev, whh_ref[...], preferred_element_type=jnp.float32)
           + bias_ref[...])

    sig = jax.nn.sigmoid(pre[:, :4 * H])        # one EUP pass over all gates
    f = sig[:, 0 * H:1 * H]
    i = sig[:, 1 * H:2 * H]
    o = sig[:, 2 * H:3 * H]
    g = jnp.tanh(pre[:, 3 * H:4 * H])
    z = pre[:, 4 * H:4 * H + 1]

    c_1 = (1.0 - z_tm1) * f * c_prev + i * g
    h_1 = o * jnp.tanh(c_1)

    mask = jnp.minimum(z_lm1 + z_tm1, 1.0)
    c_1 = mask * c_1 + (1.0 - mask) * c_prev
    h_1 = mask * h_1 + (1.0 - mask) * h_prev

    hard = jnp.clip(slope * z + 0.5, 0.0, 1.0)
    z_new = jnp.where(hard > 0.5, 1.0, 0.0).astype(jnp.float32)

    # carry state
    h_sc[...] = h_1
    c_sc[...] = c_1
    z_sc[...] = z_new
    # stream outputs
    hseq_ref[...] = h_1
    cseq_ref[...] = c_1
    zseq_ref[...] = z_new


def hmlstm_sequence(xb_seq, xt_seq, z_lm1_seq, h_0, c_0, z_0,
                    weight_bh, weight_hh, weight_th, bias, *, slope=0.5):
    """Run the HMLSTM cell over a full sequence inside one pallas_call.

    xb_seq: (T, B, input_size), xt_seq: (T, B, hidden_size),
    z_lm1_seq: (T, B). Returns (h_seq, c_seq, z_seq) with leading T dim.
    """
    T, B, IN = xb_seq.shape
    H = h_0.shape[1]
    G = 4 * H + 1

    z_lm1_3d = z_lm1_seq.reshape(T, B, 1).astype(jnp.float32)
    z0_2d = z_0.reshape(B, 1).astype(jnp.float32)
    bias_2d = bias.reshape(1, G).astype(jnp.float32)

    # z_lm1 is a known input stream: fold it into the bottom input once, and
    # concatenate bottom/top features + their weights so each step does one
    # wide input matmul plus the recurrent h matmul.
    xbt_seq = jnp.concatenate([z_lm1_3d * xb_seq, xt_seq], axis=2)  # (T,B,IN+H)
    w_bt = jnp.concatenate([weight_bh, weight_th], axis=0)          # (IN+H, G)

    kernel = functools.partial(_hmlstm_seq_kernel, input_size=IN,
                               hidden_size=H, slope=slope)

    grid_spec = pltpu.PrefetchScalarGridSpec(
        num_scalar_prefetch=0,
        grid=(T,),
        in_specs=[
            pl.BlockSpec((None, B, IN + H), lambda t: (t, 0, 0)),  # streamed x
            pl.BlockSpec((None, B, 1), lambda t: (t, 0, 0)),       # streamed z_lm1
            pl.BlockSpec((B, H), lambda t: (0, 0)),                # h_0 (resident)
            pl.BlockSpec((B, H), lambda t: (0, 0)),                # c_0 (resident)
            pl.BlockSpec((B, 1), lambda t: (0, 0)),                # z_0 (resident)
            pl.BlockSpec((IN + H, G), lambda t: (0, 0)),           # W_bt (resident)
            pl.BlockSpec((H, G), lambda t: (0, 0)),                # W_hh (resident)
            pl.BlockSpec((1, G), lambda t: (0, 0)),                # bias (resident)
        ],
        out_specs=[
            pl.BlockSpec((None, B, H), lambda t: (t, 0, 0)),
            pl.BlockSpec((None, B, H), lambda t: (t, 0, 0)),
            pl.BlockSpec((None, B, 1), lambda t: (t, 0, 0)),
        ],
        scratch_shapes=[
            pltpu.VMEM((B, H), jnp.float32),   # h carry
            pltpu.VMEM((B, H), jnp.float32),   # c carry
            pltpu.VMEM((B, 1), jnp.float32),   # z carry
        ],
    )

    h_seq, c_seq, z_seq = pl.pallas_call(
        kernel,
        grid_spec=grid_spec,
        out_shape=(
            jax.ShapeDtypeStruct((T, B, H), jnp.float32),
            jax.ShapeDtypeStruct((T, B, H), jnp.float32),
            jax.ShapeDtypeStruct((T, B, 1), jnp.float32),
        ),
        compiler_params=pltpu.CompilerParams(
            dimension_semantics=("arbitrary",)),   # recurrence: sequential grid
    )(xbt_seq, z_lm1_3d, h_0, c_0, z0_2d, w_bt, weight_hh, bias_2d)

    return h_seq, c_seq, z_seq.reshape(T, B)


# ----------------------------------------------------------------------------
# Pure-JAX reference (mirrors the torch forward).
# ----------------------------------------------------------------------------
def reference_step(input_bottom, input_top, h_0, c_0, z_tm1, z_lm1,
                   weight_bh, weight_hh, weight_th, bias, slope=0.5):
    H = h_0.shape[1]
    hp = jax.lax.Precision.HIGHEST
    wh_b = jnp.dot(h_0, weight_hh, precision=hp) + bias[None, :]
    wb = z_lm1[:, None] * jnp.dot(input_bottom, weight_bh, precision=hp)
    wt = z_tm1[:, None] * jnp.dot(input_top, weight_th, precision=hp)
    pre = wh_b + wb + wt
    f, i, o, g, z = (pre[:, :H], pre[:, H:2 * H], pre[:, 2 * H:3 * H],
                     pre[:, 3 * H:4 * H], pre[:, 4 * H:])
    c_1 = ((1 - z_tm1)[:, None] * jax.nn.sigmoid(f) * c_0
           + jax.nn.sigmoid(i) * jnp.tanh(g))
    h_1 = jax.nn.sigmoid(o) * jnp.tanh(c_1)
    mask = jnp.minimum(z_lm1 + z_tm1, 1.0)
    c_1 = mask[:, None] * c_1 + (1 - mask)[:, None] * c_0
    h_1 = mask[:, None] * h_1 + (1 - mask)[:, None] * h_0
    z_mask = jnp.where(jnp.clip(slope * z + 0.5, 0.0, 1.0) > 0.5,
                       1.0, 0.0).squeeze(-1)
    return h_1, c_1, z_mask


if __name__ == "__main__":
    batch = 8
    input_size = 16
    hidden_size = 32
    seq_len = 8
    G = 4 * hidden_size + 1

    key = jax.random.PRNGKey(0)
    keys = jax.random.split(key, 12)

    # Deterministic parameter init (mirrors reset_parameters: U(-stdv, stdv), bias=0).
    stdv = 1.0 / math.sqrt(hidden_size)
    weight_bh = jax.random.uniform(keys[0], (input_size, G), jnp.float32, -stdv, stdv)
    weight_hh = jax.random.uniform(keys[1], (hidden_size, G), jnp.float32, -stdv, stdv)
    weight_th = jax.random.uniform(keys[2], (hidden_size, G), jnp.float32, -stdv, stdv)
    bias = jnp.zeros((G,), jnp.float32)

    # Note: weight_th has hidden_size rows, so input_top is (B, hidden_size).
    input_bottom = jax.random.normal(keys[3], (batch, input_size), jnp.float32)
    input_top = jax.random.normal(keys[4], (batch, hidden_size), jnp.float32)
    h_0 = jax.random.normal(keys[5], (batch, hidden_size), jnp.float32)
    c_0 = jax.random.normal(keys[6], (batch, hidden_size), jnp.float32)
    z_tm1 = (jax.random.uniform(keys[7], (batch,)) > 0.5).astype(jnp.float32)
    z_lm1 = (jax.random.uniform(keys[8], (batch,)) > 0.5).astype(jnp.float32)

    # ----- single-step cell (exact module forward) -----
    h_1, c_1, z_mask = hmlstm_cell(input_bottom, input_top, h_0, c_0, z_tm1, z_lm1,
                                   weight_bh, weight_hh, weight_th, bias)
    jax.block_until_ready((h_1, c_1, z_mask))

    h_r, c_r, z_r = reference_step(input_bottom, input_top, h_0, c_0, z_tm1, z_lm1,
                                   weight_bh, weight_hh, weight_th, bias)
    assert h_1.shape == (batch, hidden_size)
    assert c_1.shape == (batch, hidden_size)
    assert z_mask.shape == (batch,)
    assert jnp.allclose(h_1, h_r, atol=2e-5), "h mismatch"
    assert jnp.allclose(c_1, c_r, atol=2e-5), "c mismatch"
    assert jnp.allclose(z_mask, z_r, atol=2e-5), "z mismatch"

    # ----- in-kernel sequence recurrence (weights resident, state in VMEM) -----
    xb_seq = jax.random.normal(keys[9], (seq_len, batch, input_size), jnp.float32)
    xt_seq = jax.random.normal(keys[10], (seq_len, batch, hidden_size), jnp.float32)
    z_lm1_seq = (jax.random.uniform(keys[11], (seq_len, batch)) > 0.5).astype(jnp.float32)

    h_seq, c_seq, z_seq = hmlstm_sequence(xb_seq, xt_seq, z_lm1_seq,
                                          h_0, c_0, z_tm1,
                                          weight_bh, weight_hh, weight_th, bias)
    jax.block_until_ready((h_seq, c_seq, z_seq))

    h, c, z = h_0, c_0, z_tm1
    for t in range(seq_len):
        h, c, z = reference_step(xb_seq[t], xt_seq[t], h, c, z, z_lm1_seq[t],
                                 weight_bh, weight_hh, weight_th, bias)
        assert jnp.allclose(h_seq[t], h, atol=1e-4), f"seq h mismatch at t={t}"
        assert jnp.allclose(c_seq[t], c, atol=1e-4), f"seq c mismatch at t={t}"
        assert jnp.allclose(z_seq[t], z, atol=1e-4), f"seq z mismatch at t={t}"

    print("KERNEL_OK")
</pallas_src>

<mosaic_0001>
module attributes {stable_mosaic.version = 11 : i64} {
  func.func @_hmlstm_step_kernel(%arg0: memref<8x80xf32, #tpu.memory_space<vmem>>, %arg1: memref<8x32xf32, #tpu.memory_space<vmem>>, %arg2: memref<8x32xf32, #tpu.memory_space<vmem>>, %arg3: memref<8x1xf32, #tpu.memory_space<vmem>>, %arg4: memref<8x1xf32, #tpu.memory_space<vmem>>, %arg5: memref<80x129xf32, #tpu.memory_space<vmem>>, %arg6: memref<1x129xf32, #tpu.memory_space<vmem>>, %arg7: memref<8x32xf32, #tpu.memory_space<vmem>>, %arg8: memref<8x32xf32, #tpu.memory_space<vmem>>, %arg9: memref<8x1xf32, #tpu.memory_space<vmem>>) attributes {dimension_semantics = [], scalar_prefetch = 0 : i64, scratch_operands = 0 : i64, tpu.core_type = #tpu.core_type<tc>} {
    %c0 = arith.constant 0 : index
    %c0_0 = arith.constant 0 : index
    %0 = vector.load %arg1[%c0, %c0_0] : memref<8x32xf32, #tpu.memory_space<vmem>>, vector<8x32xf32>
    %c0_1 = arith.constant 0 : index
    %c0_2 = arith.constant 0 : index
    %1 = vector.load %arg2[%c0_1, %c0_2] : memref<8x32xf32, #tpu.memory_space<vmem>>, vector<8x32xf32>
    %c0_3 = arith.constant 0 : index
    %c0_4 = arith.constant 0 : index
    %2 = vector.load %arg3[%c0_3, %c0_4] : memref<8x1xf32, #tpu.memory_space<vmem>>, vector<8x1xf32>
    %c0_5 = arith.constant 0 : index
    %c0_6 = arith.constant 0 : index
    %3 = vector.load %arg4[%c0_5, %c0_6] : memref<8x1xf32, #tpu.memory_space<vmem>>, vector<8x1xf32>
    %c0_7 = arith.constant 0 : index
    %c0_8 = arith.constant 0 : index
    %4 = vector.load %arg0[%c0_7, %c0_8] : memref<8x80xf32, #tpu.memory_space<vmem>>, vector<8x80xf32>
    %c0_9 = arith.constant 0 : index
    %c0_10 = arith.constant 0 : index
    %5 = vector.load %arg5[%c0_9, %c0_10] : memref<80x129xf32, #tpu.memory_space<vmem>>, vector<80x129xf32>
    %cst = arith.constant dense<0.000000e+00> : vector<8x129xf32>
    %6 = tpu.matmul %4, %5, %cst {dimension_numbers = #tpu.dot_dimension_numbers<[1], [0], [0], [1], [0, 0, 1, 1], [], []>} : vector<8x80xf32>, vector<80x129xf32>, vector<8x129xf32> -> vector<8x129xf32>
    %c0_11 = arith.constant 0 : index
    %c0_12 = arith.constant 0 : index
    %7 = vector.load %arg6[%c0_11, %c0_12] : memref<1x129xf32, #tpu.memory_space<vmem>>, vector<1x129xf32>
    %8 = vector.broadcast %7 : vector<1x129xf32> to vector<8x129xf32>
    %9 = arith.addf %6, %8 : vector<8x129xf32>
    %10 = vector.extract_strided_slice %9 {offsets = [0, 0], sizes = [8, 128], strides = [1, 1]} : vector<8x129xf32> to vector<8x128xf32>
    %11 = arith.negf %10 : vector<8x128xf32>
    %12 = math.exp %11 : vector<8x128xf32>
    %cst_13 = arith.constant 1.000000e+00 : f32
    %13 = vector.broadcast %cst_13 : f32 to vector<8x128xf32>
    %14 = arith.addf %13, %12 : vector<8x128xf32>
    %15 = arith.divf %13, %14 : vector<8x128xf32>
    %16 = vector.extract_strided_slice %15 {offsets = [0, 0], sizes = [8, 32], strides = [1, 1]} : vector<8x128xf32> to vector<8x32xf32>
    %17 = vector.extract_strided_slice %15 {offsets = [0, 32], sizes = [8, 32], strides = [1, 1]} : vector<8x128xf32> to vector<8x32xf32>
    %18 = vector.extract_strided_slice %15 {offsets = [0, 64], sizes = [8, 32], strides = [1, 1]} : vector<8x128xf32> to vector<8x32xf32>
    %19 = vector.extract_strided_slice %9 {offsets = [0, 96], sizes = [8, 32], strides = [1, 1]} : vector<8x129xf32> to vector<8x32xf32>
    %20 = math.tanh %19 : vector<8x32xf32>
    %21 = vector.extract_strided_slice %9 {offsets = [0, 128], sizes = [8, 1], strides = [1, 1]} : vector<8x129xf32> to vector<8x1xf32>
    %cst_14 = arith.constant 1.000000e+00 : f32
    %22 = vector.broadcast %cst_14 : f32 to vector<8x1xf32>
    %23 = arith.subf %22, %2 : vector<8x1xf32>
    %24 = vector.broadcast %23 : vector<8x1xf32> to vector<8x32xf32>
    %25 = arith.mulf %24, %16 : vector<8x32xf32>
    %26 = arith.mulf %25, %1 : vector<8x32xf32>
    %27 = arith.mulf %17, %20 : vector<8x32xf32>
    %28 = arith.addf %26, %27 : vector<8x32xf32>
    %29 = math.tanh %28 : vector<8x32xf32>
    %30 = arith.mulf %18, %29 : vector<8x32xf32>
    %31 = arith.addf %3, %2 : vector<8x1xf32>
    %cst_15 = arith.constant 1.000000e+00 : f32
    %32 = vector.broadcast %cst_15 : f32 to vector<8x1xf32>
    %33 = arith.minimumf %31, %32 : vector<8x1xf32>
    %34 = vector.broadcast %33 : vector<8x1xf32> to vector<8x32xf32>
    %35 = arith.mulf %34, %28 : vector<8x32xf32>
    %cst_16 = arith.constant 1.000000e+00 : f32
    %36 = vector.broadcast %cst_16 : f32 to vector<8x1xf32>
    %37 = arith.subf %36, %33 : vector<8x1xf32>
    %38 = vector.broadcast %37 : vector<8x1xf32> to vector<8x32xf32>
    %39 = arith.mulf %38, %1 : vector<8x32xf32>
    %40 = arith.addf %35, %39 : vector<8x32xf32>
    %41 = vector.broadcast %33 : vector<8x1xf32> to vector<8x32xf32>
    %42 = arith.mulf %41, %30 : vector<8x32xf32>
    %cst_17 = arith.constant 1.000000e+00 : f32
    %43 = vector.broadcast %cst_17 : f32 to vector<8x1xf32>
    %44 = arith.subf %43, %33 : vector<8x1xf32>
    %45 = vector.broadcast %44 : vector<8x1xf32> to vector<8x32xf32>
    %46 = arith.mulf %45, %0 : vector<8x32xf32>
    %47 = arith.addf %42, %46 : vector<8x32xf32>
    %cst_18 = arith.constant 5.000000e-01 : f32
    %48 = vector.broadcast %cst_18 : f32 to vector<8x1xf32>
    %49 = arith.mulf %48, %21 : vector<8x1xf32>
    %cst_19 = arith.constant 5.000000e-01 : f32
    %50 = vector.broadcast %cst_19 : f32 to vector<8x1xf32>
    %51 = arith.addf %49, %50 : vector<8x1xf32>
    %cst_20 = arith.constant 0.000000e+00 : f32
    %cst_21 = arith.constant 1.000000e+00 : f32
    %52 = vector.broadcast %cst_20 : f32 to vector<8x1xf32>
    %53 = arith.maximumf %52, %51 : vector<8x1xf32>
    %54 = vector.broadcast %cst_21 : f32 to vector<8x1xf32>
    %55 = arith.minimumf %54, %53 : vector<8x1xf32>
    %cst_22 = arith.constant 5.000000e-01 : f32
    %56 = vector.broadcast %cst_22 : f32 to vector<8x1xf32>
    %57 = arith.cmpf ogt, %55, %56 : vector<8x1xf32>
    %cst_23 = arith.constant 1.000000e+00 : f32
    %cst_24 = arith.constant 0.000000e+00 : f32
    %58 = vector.broadcast %cst_23 : f32 to vector<8x1xf32>
    %59 = vector.broadcast %cst_24 : f32 to vector<8x1xf32>
    %60 = arith.select %57, %58, %59 : vector<8x1xi1>, vector<8x1xf32>
    %c0_25 = arith.constant 0 : index
    %c0_26 = arith.constant 0 : index
    %61 = vector.load %arg9[%c0_25, %c0_26] : memref<8x1xf32, #tpu.memory_space<vmem>>, vector<8x1xf32>
    tpu.vector_store %arg9[%c0_25, %c0_26], %60 {strides = array<i32>} : memref<8x1xf32, #tpu.memory_space<vmem>>, vector<8x1xf32>,
    %c0_27 = arith.constant 0 : index
    %c0_28 = arith.constant 0 : index
    %62 = vector.load %arg7[%c0_27, %c0_28] : memref<8x32xf32, #tpu.memory_space<vmem>>, vector<8x32xf32>
    tpu.vector_store %arg7[%c0_27, %c0_28], %47 {strides = array<i32>} : memref<8x32xf32, #tpu.memory_space<vmem>>, vector<8x32xf32>,
    %c0_29 = arith.constant 0 : index
    %c0_30 = arith.constant 0 : index
    %63 = vector.load %arg8[%c0_29, %c0_30] : memref<8x32xf32, #tpu.memory_space<vmem>>, vector<8x32xf32>
    tpu.vector_store %arg8[%c0_29, %c0_30], %40 {strides = array<i32>} : memref<8x32xf32, #tpu.memory_space<vmem>>, vector<8x32xf32>,
    return
  }
}

</mosaic_0001>

<llo_original>
// kernel: tpu_custom_call.1
$region0: #{tpu_custom_call.1}
  #allocation0 [shape = 'u32[]', space=smem, size = 0x4, offset = 0x4, fixed_abs, tag = 'smem constant byte address 0x4 - core index']
  #allocation1 [shape = 'u32[72,128]{1,0:T(1,128)}', space=vmem, size = 0x9000, scoped, tag = 'internal scratch']
  %s0 = inlined_call_operand.vmem [shape: f32[8,80], index: 0, kind: input, shape index: {}]
  %s1 = inlined_call_operand.vmem [shape: f32[8,32], index: 1, kind: input, shape index: {}]
  %s2 = inlined_call_operand.vmem [shape: f32[8,32], index: 2, kind: input, shape index: {}]
  %s3 = inlined_call_operand.vmem [shape: f32[8,1], index: 3, kind: input, shape index: {}]
  %s4 = inlined_call_operand.vmem [shape: f32[8,1], index: 4, kind: input, shape index: {}]
  %s5 = inlined_call_operand.vmem [shape: f32[80,129], index: 5, kind: input, shape index: {}]
  %s6 = inlined_call_operand.vmem [shape: f32[1,129], index: 6, kind: input, shape index: {}]
  %s7 = inlined_call_operand.hbm [shape: f32[8,32], index: 7, kind: output, shape index: {0}]
  %s8 = inlined_call_operand.hbm [shape: f32[8,32], index: 8, kind: output, shape index: {1}]
  %s9 = inlined_call_operand.vmem [shape: f32[8,1], index: 9, kind: output, shape index: {2}]
  %10 = xla_tuple %s7, %s8, %s9
  %s11 = sld [smem:[#allocation0]]
  $region54: #{tpu_custom_call.1} parent=0
    _
  %s13 = ssub.s32 1, %s11
  %s14 = scalar_select 0, %s13, %s11
  $region1: #{tpu_custom_call.1} parent=0
    #allocation2 [shape = 'u8[4096]{0}', space=vmem, size = 0x1000, scoped, tag = 'output window, operand 0, single buffered']
    #allocation3 [shape = 's32[1]{0}', space=sflag, size = 0x4, scoped, tag = 'scoped memory for tpu_custom_call.1']
    #allocation4 [shape = 'u8[4096]{0}', space=vmem, size = 0x1000, scoped, tag = 'output window, operand 1, single buffered']
    #allocation5 [shape = 's32[1]{0}', space=sflag, size = 0x4, scoped, tag = 'scoped memory for tpu_custom_call.1']
    %15 = vsyncpa [#allocation3], 0
    %16 = vsyncpa [#allocation5], 0
    // Predicated region
    $region2: #{tpu_custom_call.1} parent=1 // pred_check
      _
    $region3: #{tpu_custom_call.1} parent=1 // pred_check_branch
      %18 = sbr.rel (0) target = $region5
    $region4: #{tpu_custom_call.1} parent=1 // pred_region
      _
    $region5: #{tpu_custom_call.1} parent=1 // pred_fallthru
      _
    // Predicated region
    $region6: #{tpu_custom_call.1} parent=1 // pred_check
      _
    $region7: #{tpu_custom_call.1} parent=1 // pred_check_branch
      %20 = sbr.rel (0) target = $region9
    $region8: #{tpu_custom_call.1} parent=1 // pred_region
      _
    $region9: #{tpu_custom_call.1} parent=1 // pred_fallthru
      _
    // Predicated region
    $region10: #{tpu_custom_call.1} parent=1 // pred_check
      _
    $region11: #{tpu_custom_call.1} parent=1 // pred_check_branch
      %22 = sbr.rel (0) target = $region13
    $region12: #{tpu_custom_call.1} parent=1 // pred_region
      _
    $region13: #{tpu_custom_call.1} parent=1 // pred_fallthru
      _
    // Predicated region
    $region14: #{tpu_custom_call.1} parent=1 // pred_check
      _
    $region15: #{tpu_custom_call.1} parent=1 // pred_check_branch
      %24 = sbr.rel (0) target = $region17
    $region16: #{tpu_custom_call.1} parent=1 // pred_region
      _
    $region17: #{tpu_custom_call.1} parent=1 // pred_fallthru
      _
    // Predicated region
    $region18: #{tpu_custom_call.1} parent=1 // pred_check
      _
    $region19: #{tpu_custom_call.1} parent=1 // pred_check_branch
      %26 = sbr.rel (0) target = $region21
    $region20: #{tpu_custom_call.1} parent=1 // pred_region
      _
    $region21: #{tpu_custom_call.1} parent=1 // pred_fallthru
      _
    // Predicated region
    $region22: #{tpu_custom_call.1} parent=1 // pred_check
      _
    $region23: #{tpu_custom_call.1} parent=1 // pred_check_branch
      %28 = sbr.rel (0) target = $region25
    $region24: #{tpu_custom_call.1} parent=1 // pred_region
      _
    $region25: #{tpu_custom_call.1} parent=1 // pred_fallthru
      _
    // Predicated region
    $region26: #{tpu_custom_call.1} parent=1 // pred_check
      _
    $region27: #{tpu_custom_call.1} parent=1 // pred_check_branch
      %30 = sbr.rel (0) target = $region29
    $region28: #{tpu_custom_call.1} parent=1 // pred_region
      _
    $region29: #{tpu_custom_call.1} parent=1 // pred_fallthru
      _
    %v31 = vld [vmem:[%s1] sm:$0xff]
    %v32 = vld [vmem:[%s2] sm:$0xff]
    %v33 = vld [vmem:[%s3] sm:$0xff]
    %v34 = vld [vmem:[%s4] sm:$0xff]
    %v35 = vld [vmem:[%s0] sm:$0xff]
    %v36 = vld [vmem:[%s5] sm:$0xff]
    %v37 = vld [vmem:[%s5 + $0x8] sm:$0xff]
    %v38 = vld [vmem:[%s5 + $0x10] sm:$0xff]
    %v39 = vld [vmem:[%s5 + $0x18] sm:$0xff]
    %v40 = vld [vmem:[%s5 + $0x20] sm:$0xff]
    %v41 = vld [vmem:[%s5 + $0x28] sm:$0xff]
    %v42 = vld [vmem:[%s5 + $0x30] sm:$0xff]
    %v43 = vld [vmem:[%s5 + $0x38] sm:$0xff]
    %v44 = vld [vmem:[%s5 + $0x40] sm:$0xff]
    %v45 = vld [vmem:[%s5 + $0x48] sm:$0xff]
    %v46 = vld [vmem:[%s5 + $0x50] sm:$0xff]
    %v47 = vld [vmem:[%s5 + $0x58] sm:$0xff]
    %v48 = vld [vmem:[%s5 + $0x60] sm:$0xff]
    %v49 = vld [vmem:[%s5 + $0x68] sm:$0xff]
    %v50 = vld [vmem:[%s5 + $0x70] sm:$0xff]
    %v51 = vld [vmem:[%s5 + $0x78] sm:$0xff]
    %v52 = vld [vmem:[%s5 + $0x80] sm:$0xff]
    %v53 = vld [vmem:[%s5 + $0x88] sm:$0xff]
    %v54 = vld [vmem:[%s5 + $0x90] sm:$0xff]
    %v55 = vld [vmem:[%s5 + $0x98] sm:$0xff]
    %v56 = vld [vmem:[%s6] sm:$0x3]
    %v58 = vperm.slane %v56, 0
    %v59 = vperm.slane %v56, 1
    %vm62 = vcmask 654336
    %v64 = vsel %vm62, %v35, 0
    %66 = vmatpush.msra.mxu0 0.0
    %67 = vmatpush.msra.mxu0 0.0
    %68 = vmatpush.msra.mxu0 0.0
    %69 = vmatpush.msra.mxu0 0.0
    %70 = vmatpush.msra.mxu0 0.0
    %71 = vmatpush.msra.mxu0 0.0
    %72 = vmatpush.msra.mxu0 %v54
    %73 = vmatpush.msra.mxu0 %v52
    %74 = vmatpush.msra.mxu0 %v50
    %75 = vmatpush.msra.mxu0 %v48
    %76 = vmatpush.msra.mxu0 %v46
    %77 = vmatpush.msra.mxu0 %v44
    %78 = vmatpush.msra.mxu0 %v42
    %79 = vmatpush.msra.mxu0 %v40
    %80 = vmatpush.msra.mxu0 %v38
    %81 = vmatpush.msra.mxu0 %v36
    %82 = vmatmul.f32.gmra.mxu0 %v64
    %v83 = vpop.f32.mrf.mxu0
    %v84 = vadd.f32 %v58, %v83
    %85 = vdwg.mxu0
    %86 = vmatpush.msra.mxu0 0.0
    %87 = vmatpush.msra.mxu0 0.0
    %88 = vmatpush.msra.mxu0 0.0
    %89 = vmatpush.msra.mxu0 0.0
    %90 = vmatpush.msra.mxu0 0.0
    %91 = vmatpush.msra.mxu0 0.0
    %92 = vmatpush.msra.mxu0 %v55
    %93 = vmatpush.msra.mxu0 %v53
    %94 = vmatpush.msra.mxu0 %v51
    %95 = vmatpush.msra.mxu0 %v49
    %96 = vmatpush.msra.mxu0 %v47
    %97 = vmatpush.msra.mxu0 %v45
    %98 = vmatpush.msra.mxu0 %v43
    %99 = vmatpush.msra.mxu0 %v41
    %100 = vmatpush.msra.mxu0 %v39
    %101 = vmatpush.msra.mxu0 %v37
    %102 = vmatmul.f32.gmra.mxu0 %v64
    %v103 = vpop.f32.mrf.mxu0
    %v104 = vadd.f32 %v59, %v103
    %105 = vdwg.mxu0
    %v106 = vxor.u32 %v84, 2147483648
    %v107 = vmul.f32 %v106, 1.442695
    %v108 = vpow.pop %v107
    %v109 = vadd.f32 %v108, 1.0
    %v110 = vrcp.pop %v109
    %v111 = vmul.f32 %v109, %v110
    %v112 = vsub.f32 1.0, %v111
    %v113 = vmul.f32 %v110, %v112
    %v114 = vadd.f32 %v110, %v113
    %vm115 = vweird.f32 %v109
    %vm116 = vweird.f32 %v110
    %vm117 = vmor %vm115, %vm116
    %v118 = vsel %vm117, %v110, %v114
    %v119 = vand.u32 2147483647, %v109
    %vm120 = vcmp.eq.f32.partialorder %v119, 8.507059e+37
    %v121 = vand.u32 %v109, 2147483648
    %v122 = vor.u32 1.1754944e-38, %v121
    %v123 = vsel %vm120, %v122, %v118
    %v124 = vmul.f32 1.0, %v123
    %v125 = vtanh.pop %v84
    %v126 = vsub.f32 1.0, %v33
    %128 = vset.pattern.permute.xlu0 0
    %129 = vperm.xlu0 %128, %v126
    %v130 = vpop.permute.xlu0 %129
    %v132 = vmul.f32 %v130, %v124
    %v133 = vmul.f32 %v132, %v32
    %135 = vrot.lane.b32.xlu0 %v125, 64
    %v136 = vpop.permute.xlu0 %135
    %v138 = vmul.f32 %v124, %v136
    %140 = vrot.lane.b32.xlu0 %v138, 96
    %v141 = vpop.permute.xlu0 %140
    %v143 = vadd.f32 %v133, %v141
    %v144 = vtanh.pop %v143
    %146 = vrot.lane.b32.xlu0 %v144, 64
    %v147 = vpop.permute.xlu0 %146
    %v149 = vmul.f32 %v124, %v147
    %v150 = vadd.f32 %v34, %v33
    %v151 = vmin.f32 %v150, 1.0
    %153 = vset.pattern.permute.xlu0 0
    %154 = vperm.xlu0 %153, %v151
    %v155 = vpop.permute.xlu0 %154
    %v157 = vmul.f32 %v155, %v143
    %v158 = vsub.f32 1.0, %v151
    %160 = vset.pattern.permute.xlu0 0
    %161 = vperm.xlu0 %160, %v158
    %v162 = vpop.permute.xlu0 %161
    %v164 = vmul.f32 %v162, %v32
    %v165 = vadd.f32 %v157, %v164
    %v166 = vmul.f32 %v155, %v149
    %v167 = vmul.f32 %v162, %v31
    %169 = vrot.lane.b32.xlu0 %v167, 64
    %v170 = vpop.permute.xlu0 %169
    %v172 = vadd.f32 %v166, %v170
    %v173 = vmul.f32 %v104, 0.5
    %v174 = vadd.f32 %v173, 0.5
    %v175 = vmax.f32 %v174, 0.0
    %v176 = vmin.f32 %v175, 1.0
    %vm177 = vcmp.gt.f32.partialorder %v176, 0.5
    %v178 = vsel %vm177, 1.0, 0.0
    %vm179 = vcmask 7168
    %180 = vst.msk [vmem:[%s9] sm:$0xff] %vm179, %v178
    %182 = vrot.lane.b32.xlu0 %v172, 64
    %v183 = vpop.permute.xlu0 %182
    %vm185 = vcmask 261120
    %186 = vst.msk [vmem:[#allocation2] sm:$0xff] %vm185, %v183
    %187 = vst.msk [vmem:[#allocation4] sm:$0xff] %vm185, %v165
    // Predicated region
    $region30: #{tpu_custom_call.1} parent=1 // pred_check
      _
    $region31: #{tpu_custom_call.1} parent=1 // pred_check_branch
      %189 = sbr.rel (0) target = $region33
    $region32: #{tpu_custom_call.1} parent=1 // pred_region
      %191 = vsyncadd [#allocation3], 0
      %s193 = sshll.u32 [#allocation2], 4
      %s194 = int_to_ptr.vmem [resolvable:$true] %s193
      %s195 = sshll.u32 %s7, 4
      %s196 = int_to_ptr.hbm [resolvable:$true] %s195
      %198 = dma.vmem_to_hbm [thread:$0]  %s194, 128, %s196, [#allocation3]
    $region33: #{tpu_custom_call.1} parent=1 // pred_fallthru
      _
    // Predicated region
    $region34: #{tpu_custom_call.1} parent=1 // pred_check
      _
    $region35: #{tpu_custom_call.1} parent=1 // pred_check_branch
      %200 = sbr.rel (0) target = $region37
    $region36: #{tpu_custom_call.1} parent=1 // pred_region
      %202 = vsyncadd [#allocation5], 0
      %s204 = sshll.u32 [#allocation4], 4
      %s205 = int_to_ptr.vmem [resolvable:$true] %s204
      %s206 = sshll.u32 %s8, 4
      %s207 = int_to_ptr.hbm [resolvable:$true] %s206
      %209 = dma.vmem_to_hbm [thread:$0]  %s205, 128, %s207, [#allocation5]
    $region37: #{tpu_custom_call.1} parent=1 // pred_fallthru
      _
    // Predicated region
    $region38: #{tpu_custom_call.1} parent=1 // pred_check
      _
    $region39: #{tpu_custom_call.1} parent=1 // pred_check_branch
      %211 = sbr.rel (0) target = $region41
    $region40: #{tpu_custom_call.1} parent=1 // pred_region
      _
    $region41: #{tpu_custom_call.1} parent=1 // pred_fallthru
      _
    // Predicated region
    $region42: #{tpu_custom_call.1} parent=1 // pred_check
      _
    $region43: #{tpu_custom_call.1} parent=1 // pred_check_branch
      %213 = sbr.rel (0) target = $region45
    $region44: #{tpu_custom_call.1} parent=1 // pred_region
      %215 = dma.done [#allocation3], 128
    $region45: #{tpu_custom_call.1} parent=1 // pred_fallthru
      _
    // Predicated region
    $region46: #{tpu_custom_call.1} parent=1 // pred_check
      _
    $region47: #{tpu_custom_call.1} parent=1 // pred_check_branch
      %217 = sbr.rel (0) target = $region49
    $region48: #{tpu_custom_call.1} parent=1 // pred_region
      %219 = dma.done [#allocation5], 128
    $region49: #{tpu_custom_call.1} parent=1 // pred_fallthru
      _
    // Predicated region
    $region50: #{tpu_custom_call.1} parent=1 // pred_check
      _
    $region51: #{tpu_custom_call.1} parent=1 // pred_check_branch
      %221 = sbr.rel (0) target = $region53
    $region52: #{tpu_custom_call.1} parent=1 // pred_region
      _
    $region53: #{tpu_custom_call.1} parent=1 // pred_fallthru
      _
    %222 = vsyncpa [#allocation3], 1
    %223 = vsyncpa [#allocation5], 1

</llo_original>
